<compile_context>
chip_gen: v6e
topology: v6e:2x2x1
jax: 0.10.0
libtpu: 0.0.40
codegen_flags: <defaults>
</compile_context>

<pallas_src>
import functools

import jax
import jax.numpy as jnp
from jax.experimental import pallas as pl
from jax.experimental.pallas import tpu as pltpu

_LANE = 128     # lane width of the packed 2-D slab
_TR_CAP = 2048  # max block rows: (2048, 128) f32 = 1 MiB per buffer (v7x-safe)


def _round_up(x, m):
    return ((x + m - 1) // m) * m


def _contrastive_kernel(t_ref, x_ref, out_ref, acc_ref, *,
                        n_crop, n_total, inv_crop, inv_weed):
    """Grid axis 0 tiles the row axis of the packed (R, 128) slab.

    t_ref:   (1,)      f32 SMEM  (t_prime)
    x_ref:   (TR, 128) VMEM tile of packed logits (crop flat ++ weed flat, zero-padded)
    out_ref: (1, 1)    f32 SMEM  (scalar loss, written on the last step)
    acc_ref: (TR, 128) f32 VMEM scratch (per-element weighted partial sums)
    """
    step = pl.program_id(0)

    @pl.when(step == 0)
    def _init():
        acc_ref[...] = jnp.zeros_like(acc_ref)

    tr, lanes = x_ref.shape
    rows = jax.lax.broadcasted_iota(jnp.int32, (tr, lanes), 0)
    cols = jax.lax.broadcasted_iota(jnp.int32, (tr, lanes), 1)
    gidx = (step * tr + rows) * lanes + cols          # flat index into the packed stream

    # exp(t') in-kernel as a tiny (1,1) vector op on the EUP; broadcasts over the block.
    scale = jnp.exp(jnp.full((1, 1), t_ref[0], dtype=jnp.float32))

    # BCEWithLogits against the fixed one-hot labels folds to softplus(+/-z):
    #   crop labels [1,0]: class0 -> softplus(-z), class1 -> softplus(+z)
    #   weed labels [0,1]: class0 -> softplus(+z), class1 -> softplus(-z)
    # Class == flat-index parity (both segments start at even offsets), so the sign
    # is a pure VALU select -- no sentinel padding, no sublane slicing.
    is_class0 = (gidx & 1) == 0
    is_crop = gidx < n_crop
    sign = jnp.where(is_class0, -1.0, 1.0) * jnp.where(is_crop, 1.0, -1.0)

    z = x_ref[...].astype(jnp.float32) * scale * sign
    sp = jnp.maximum(z, 0.0) + jnp.log1p(jnp.exp(-jnp.abs(z)))   # stable softplus

    # Per-element weight folds the 1/(S*2*B^2) divisors; padded tail gets weight 0.
    w = jnp.where(gidx < n_total,
                  jnp.where(is_crop, jnp.float32(inv_crop), jnp.float32(inv_weed)),
                  jnp.float32(0.0))
    acc_ref[...] += sp * w                                        # one full-block update

    @pl.when(step == pl.num_programs(0) - 1)
    def _finalize():
        out_ref[0, 0] = jnp.sum(acc_ref[...])


def contrastive_loss(scores, t_prime):
    """scores: list (stages) of [crop_logits (Bc, 2), weed_logits (Bw, 2)] arrays."""
    S = len(scores)
    crop = jnp.stack([st[0] for st in scores], axis=0)   # (S, Bc, 2), native dtype
    weed = jnp.stack([st[1] for st in scores], axis=0)   # (S, Bw, 2), native dtype
    Bc, Bw = int(crop.shape[1]), int(weed.shape[1])
    # TODO(synk): per-stage varying batch sizes are not handled (jnp.stack enforces equality).

    n_crop = int(crop.size)                               # S * Bc * 2 (even)
    n_weed = int(weed.size)
    n_total = n_crop + n_weed
    if n_total == 0:                                      # both-groups-empty branch
        return jnp.zeros((), jnp.float32)

    # stage loss = crop_sum/(2*Bc^2) + weed_sum/(2*Bw^2); the mean over S stages folds
    # into constant per-element weights.  An empty group contributes 0 (numel()==0 branch).
    inv_crop = 0.0 if Bc == 0 else 1.0 / (float(S) * 2.0 * float(Bc) * float(Bc))
    inv_weed = 0.0 if Bw == 0 else 1.0 / (float(S) * 2.0 * float(Bw) * float(Bw))

    # Single packed lane-dense stream: [crop flat ++ weed flat], zero-padded to a whole
    # number of (TR, 128) blocks.  Zero padding is exact because padded lanes get
    # weight 0 in-kernel (no +/-1e30 sentinels, no wrapper-side transpose).
    flat = jnp.concatenate([crop.reshape(-1), weed.reshape(-1)], axis=0)
    rows = pl.cdiv(n_total, _LANE)
    tr = min(_round_up(max(rows, 1), 8), _TR_CAP)
    padded_rows = _round_up(rows, tr)
    flat = jnp.pad(flat, (0, padded_rows * _LANE - n_total))
    x2 = flat.reshape(padded_rows, _LANE)
    grid = (padded_rows // tr,)

    kernel = functools.partial(_contrastive_kernel, n_crop=n_crop, n_total=n_total,
                               inv_crop=inv_crop, inv_weed=inv_weed)
    n_pad_elems = padded_rows * _LANE
    cost = pl.CostEstimate(
        flops=12 * n_pad_elems,                     # scale/sign/select/add per element
        transcendentals=2 * n_pad_elems,            # exp + log1p per element (EUP-bound)
        bytes_accessed=int(x2.size) * x2.dtype.itemsize + 8,
    )
    out = pl.pallas_call(
        kernel,
        out_shape=jax.ShapeDtypeStruct((1, 1), jnp.float32),
        grid=grid,
        in_specs=[
            pl.BlockSpec(memory_space=pltpu.MemorySpace.SMEM),    # t_prime (1,)
            pl.BlockSpec((tr, _LANE), lambda i: (i, 0)),          # packed logits
        ],
        out_specs=pl.BlockSpec(memory_space=pltpu.MemorySpace.SMEM),
        scratch_shapes=[pltpu.VMEM((tr, _LANE), jnp.float32)],
        compiler_params=pltpu.CompilerParams(
            dimension_semantics=("arbitrary",)),                  # reduction axis
        cost_estimate=cost,
    )(t_prime.astype(jnp.float32), x2)
    return out[0, 0]


# ----------------------------- verification ----------------------------------

def _bce_with_logits_elem(z, y):
    # PyTorch's stable form: max(z,0) - z*y + log(1 + exp(-|z|))
    return jnp.maximum(z, 0.0) - z * y + jnp.log1p(jnp.exp(-jnp.abs(z)))


def _reference_loss(scores, t_prime):
    """Pure-JAX transcription of the PyTorch forward (for verification)."""
    scale = jnp.exp(t_prime[0])
    stage_losses = []
    for crop, weed in scores:
        c = crop.astype(jnp.float32) * scale
        w = weed.astype(jnp.float32) * scale
        cy = jnp.stack([jnp.ones_like(c[:, 0]), jnp.zeros_like(c[:, 1])], axis=1)
        wy = jnp.stack([jnp.zeros_like(w[:, 0]), jnp.ones_like(w[:, 1])], axis=1)
        cl = jnp.mean(_bce_with_logits_elem(c, cy)) / c.shape[0]
        wl = jnp.mean(_bce_with_logits_elem(w, wy)) / w.shape[0]
        stage_losses.append(cl + wl)
    return sum(stage_losses) / len(stage_losses)


if __name__ == "__main__":
    key = jax.random.PRNGKey(0)

    # Deterministic parameter init (matches nn.Parameter shapes in __init__).
    t_prime = jnp.array([jnp.log(10.0)], dtype=jnp.float32)   # shape (1,)
    bias = jnp.array([-10.0], dtype=jnp.float32)              # shape (1,); unused in forward

    # Synthetic "scores": 2 stages, crop (8,2) and weed (6,2) logits per stage
    # (unequal crop/weed batch sizes exercise the segment/sign/mask logic).
    S, Bc, Bw = 2, 8, 6
    keys = jax.random.split(key, 2 * S)
    scores = []
    for s in range(S):
        crop_logits = jax.random.normal(keys[2 * s + 0], (Bc, 2), dtype=jnp.float32)
        weed_logits = jax.random.normal(keys[2 * s + 1], (Bw, 2), dtype=jnp.float32)
        scores.append([crop_logits, weed_logits])

    # f32 path
    loss = contrastive_loss(scores, t_prime)
    jax.block_until_ready(loss)
    ref = _reference_loss(scores, t_prime)
    assert jnp.allclose(loss, ref, rtol=1e-5, atol=1e-6), (loss, ref)

    # native bf16 logits pass straight through; the kernel upcasts after load
    scores_bf16 = [[c.astype(jnp.bfloat16), w.astype(jnp.bfloat16)] for c, w in scores]
    loss_bf16 = contrastive_loss(scores_bf16, t_prime)
    jax.block_until_ready(loss_bf16)
    ref_bf16 = _reference_loss(scores_bf16, t_prime)
    assert jnp.allclose(loss_bf16, ref_bf16, rtol=1e-4, atol=1e-5), (loss_bf16, ref_bf16)

    print("KERNEL_OK")
</pallas_src>

<mosaic_0001>
module attributes {stable_mosaic.version = 11 : i64} {
  func.func @_contrastive_kernel(%arg0: i32, %arg1: memref<1xf32, #tpu.memory_space<smem>>, %arg2: memref<8x128xf32, #tpu.memory_space<vmem>>, %arg3: memref<1x1xf32, #tpu.memory_space<smem>>, %arg4: memref<8x128xf32, #tpu.memory_space<vmem>>) attributes {dimension_semantics = [#tpu.dimension_semantics<arbitrary>], iteration_bounds = array<i64: 1>, scalar_prefetch = 0 : i64, scratch_operands = 1 : i64, tpu.core_type = #tpu.core_type<tc>, window_params = [{transform_indices = @transform_0, window_bounds = array<i64: 1>}, {transform_indices = @transform_1, window_bounds = array<i64: 8, 128>}, {transform_indices = @transform_2, window_bounds = array<i64: 1, 1>}]} {
    %c0_i32 = arith.constant 0 : i32
    %0 = arith.cmpi eq, %arg0, %c0_i32 : i32
    %1 = arith.extui %0 : i1 to i32
    %c0_i32_0 = arith.constant 0 : i32
    %2 = arith.cmpi ne, %1, %c0_i32_0 : i32
    scf.if %2 {
      %cst_18 = arith.constant 0.000000e+00 : f32
      %53 = vector.broadcast %cst_18 : f32 to vector<8x128xf32>
      %c0_19 = arith.constant 0 : index
      %c0_20 = arith.constant 0 : index
      %54 = vector.load %arg4[%c0_19, %c0_20] : memref<8x128xf32, #tpu.memory_space<vmem>>, vector<8x128xf32>
      tpu.vector_store %arg4[%c0_19, %c0_20], %53 {strides = array<i32>} : memref<8x128xf32, #tpu.memory_space<vmem>>, vector<8x128xf32>,
    } else {
    }
    %3 = tpu.iota {dimensions = array<i32: 0>} : vector<8x128xi32>
    %4 = tpu.iota {dimensions = array<i32: 1>} : vector<8x128xi32>
    %c8_i32 = arith.constant 8 : i32
    %5 = arith.muli %arg0, %c8_i32 : i32
    %6 = vector.broadcast %5 : i32 to vector<8x128xi32>
    %7 = arith.addi %6, %3 : vector<8x128xi32>
    %c128_i32 = arith.constant 128 : i32
    %8 = vector.broadcast %c128_i32 : i32 to vector<8x128xi32>
    %9 = arith.muli %7, %8 : vector<8x128xi32>
    %10 = arith.addi %9, %4 : vector<8x128xi32>
    %c0 = arith.constant 0 : index
    %11 = memref.load %arg1[%c0] : memref<1xf32, #tpu.memory_space<smem>>
    %12 = vector.broadcast %11 : f32 to vector<1x1xf32>
    %13 = math.exp %12 : vector<1x1xf32>
    %c1_i32 = arith.constant 1 : i32
    %14 = vector.broadcast %c1_i32 : i32 to vector<8x128xi32>
    %15 = arith.andi %10, %14 : vector<8x128xi32>
    %c0_i32_1 = arith.constant 0 : i32
    %16 = vector.broadcast %c0_i32_1 : i32 to vector<8x128xi32>
    %17 = arith.cmpi eq, %15, %16 : vector<8x128xi32>
    %c32_i32 = arith.constant 32 : i32
    %18 = vector.broadcast %c32_i32 : i32 to vector<8x128xi32>
    %19 = arith.cmpi slt, %10, %18 : vector<8x128xi32>
    %cst = arith.constant -1.000000e+00 : f32
    %cst_2 = arith.constant 1.000000e+00 : f32
    %20 = vector.broadcast %cst : f32 to vector<8x128xf32>
    %21 = vector.broadcast %cst_2 : f32 to vector<8x128xf32>
    %22 = arith.select %17, %20, %21 : vector<8x128xi1>, vector<8x128xf32>
    %cst_3 = arith.constant 1.000000e+00 : f32
    %cst_4 = arith.constant -1.000000e+00 : f32
    %23 = vector.broadcast %cst_3 : f32 to vector<8x128xf32>
    %24 = vector.broadcast %cst_4 : f32 to vector<8x128xf32>
    %25 = arith.select %19, %23, %24 : vector<8x128xi1>, vector<8x128xf32>
    %26 = arith.mulf %22, %25 : vector<8x128xf32>
    %c0_5 = arith.constant 0 : index
    %c0_6 = arith.constant 0 : index
    %27 = vector.load %arg2[%c0_5, %c0_6] : memref<8x128xf32, #tpu.memory_space<vmem>>, vector<8x128xf32>
    %28 = vector.broadcast %13 : vector<1x1xf32> to vector<8x128xf32>
    %29 = arith.mulf %27, %28 : vector<8x128xf32>
    %30 = arith.mulf %29, %26 : vector<8x128xf32>
    %cst_7 = arith.constant 0.000000e+00 : f32
    %31 = vector.broadcast %cst_7 : f32 to vector<8x128xf32>
    %32 = arith.maximumf %30, %31 : vector<8x128xf32>
    %33 = math.absf %30 : vector<8x128xf32>
    %cst_8 = arith.constant 0.000000e+00 : f32
    %34 = vector.broadcast %cst_8 : f32 to vector<8x128xf32>
    %35 = arith.subf %34, %33 : vector<8x128xf32>
    %36 = math.exp %35 : vector<8x128xf32>
    %37 = math.log1p %36 : vector<8x128xf32>
    %38 = arith.addf %32, %37 : vector<8x128xf32>
    %c56_i32 = arith.constant 56 : i32
    %39 = vector.broadcast %c56_i32 : i32 to vector<8x128xi32>
    %40 = arith.cmpi slt, %10, %39 : vector<8x128xi32>
    %cst_9 = arith.constant 3.906250e-03 : f32
    %cst_10 = arith.constant 0.0069444445 : f32
    %41 = vector.broadcast %cst_9 : f32 to vector<8x128xf32>
    %42 = vector.broadcast %cst_10 : f32 to vector<8x128xf32>
    %43 = arith.select %19, %41, %42 : vector<8x128xi1>, vector<8x128xf32>
    %cst_11 = arith.constant 0.000000e+00 : f32
    %44 = vector.broadcast %cst_11 : f32 to vector<8x128xf32>
    %45 = arith.select %40, %43, %44 : vector<8x128xi1>, vector<8x128xf32>
    %c0_12 = arith.constant 0 : index
    %c0_13 = arith.constant 0 : index
    %46 = vector.load %arg4[%c0_12, %c0_13] : memref<8x128xf32, #tpu.memory_space<vmem>>, vector<8x128xf32>
    %47 = arith.mulf %38, %45 : vector<8x128xf32>
    %48 = arith.addf %46, %47 : vector<8x128xf32>
    %c0_14 = arith.constant 0 : index
    %c0_15 = arith.constant 0 : index
    %49 = vector.load %arg4[%c0_14, %c0_15] : memref<8x128xf32, #tpu.memory_space<vmem>>, vector<8x128xf32>
    tpu.vector_store %arg4[%c0_14, %c0_15], %48 {strides = array<i32>} : memref<8x128xf32, #tpu.memory_space<vmem>>, vector<8x128xf32>,
    %c0_i32_16 = arith.constant 0 : i32
    %50 = arith.cmpi eq, %arg0, %c0_i32_16 : i32
    %51 = arith.extui %50 : i1 to i32
    %c0_i32_17 = arith.constant 0 : i32
    %52 = arith.cmpi ne, %51, %c0_i32_17 : i32
    scf.if %52 {
      %c0_18 = arith.constant 0 : index
      %c0_19 = arith.constant 0 : index
      %53 = vector.load %arg4[%c0_18, %c0_19] : memref<8x128xf32, #tpu.memory_space<vmem>>, vector<8x128xf32>
      %54 = vector.shape_cast %53 : vector<8x128xf32> to vector<1x8x128xf32>
      %cst_20 = arith.constant dense<0.000000e+00> : vector<1xf32>
      %55 = vector.multi_reduction <add>, %54, %cst_20 [1, 2] : vector<1x8x128xf32> to vector<1xf32>
      %56 = vector.shape_cast %55 : vector<1xf32> to vector<1x1x1xf32>
      %57 = vector.extract %56[0, 0, 0] : f32 from vector<1x1x1xf32>
      %c0_21 = arith.constant 0 : index
      %c0_22 = arith.constant 0 : index
      %58 = memref.load %arg3[%c0_21, %c0_22] : memref<1x1xf32, #tpu.memory_space<smem>>
      memref.store %57, %arg3[%c0_21, %c0_22] : memref<1x1xf32, #tpu.memory_space<smem>>
    } else {
    }
    return
  }
  func.func @transform_0(%arg0: i32) -> i32 {
    %c0_i32 = arith.constant 0 : i32
    %c0_i32_0 = arith.constant 0 : i32
    return %c0_i32 : i32
  }
  func.func @transform_1(%arg0: i32) -> (i32, i32) {
    %c0_i32 = arith.constant 0 : i32
    %c0_i32_0 = arith.constant 0 : i32
    return %arg0, %c0_i32 : i32, i32
  }
  func.func @transform_2(%arg0: i32) -> (i32, i32) {
    %c0_i32 = arith.constant 0 : i32
    %c0_i32_0 = arith.constant 0 : i32
    %c0_i32_1 = arith.constant 0 : i32
    return %c0_i32, %c0_i32_0 : i32, i32
  }
}

</mosaic_0001>

<llo_original>
// kernel: tpu_custom_call.1
$region0: #{tpu_custom_call.1}
  #allocation0 [shape = 'u32[]', space=smem, size = 0x4, offset = 0x4, fixed_abs, tag = 'smem constant byte address 0x4 - core index']
  #allocation1 [shape = 'u32[144,128]{1,0:T(1,128)}', space=vmem, size = 0x12000, scoped, tag = 'internal scratch']
  #allocation2 [shape = 'f32[8,128]{1,0:T(8,128)}', space=vmem, size = 0x1000, scoped, tag = 'scratch operand']
  #allocation3 [shape = 'f32[1]{0:T(128)S(6)}', space=smem, size = 0x200, scoped, tag = 'scoped memory for tpu_custom_call.1']
  %s0 = inlined_call_operand.<no memory space> [shape: f32[1], index: 0, kind: input, shape index: {}]
  %s1 = inlined_call_operand.hbm [shape: f32[8,128], index: 1, kind: input, shape index: {}]
  %s2 = inlined_call_operand.hbm [shape: f32[1,1], index: 2, kind: output, shape index: {}]
  %s3 = sld [smem:[#allocation0]]
  $region30: #{tpu_custom_call.1} parent=0
    _
  %s5 = ssub.s32 1, %s3
  %s6 = scalar_select 0, %s5, %s3
  %7 = sst [smem:[#allocation3]] %s0
  $region1: #{tpu_custom_call.1} parent=0
    #allocation4 [shape = 'u8[4096]{0}', space=vmem, size = 0x1000, scoped, tag = 'input window, operand 1, single buffered']
    #allocation5 [shape = 's32[1]{0}', space=sflag, size = 0x4, scoped, tag = 'scoped memory for tpu_custom_call.1']
    #allocation6 [shape = 's32[1]{0}', space=sflag, size = 0x4, scoped, tag = 'scoped memory for tpu_custom_call.1']
    #allocation7 [shape = 'u8[512]{0}', space=smem, size = 0x200, scoped, tag = 'output window, operand 0, single buffered']
    %8 = vsyncpa [#allocation5], 0
    %9 = vsyncpa [#allocation6], 0
    // Predicated region
    $region2: #{tpu_custom_call.1} parent=1 // pred_check
      _
    $region3: #{tpu_custom_call.1} parent=1 // pred_check_branch
      %11 = sbr.rel (0) target = $region5
    $region4: #{tpu_custom_call.1} parent=1 // pred_region
      _
    $region5: #{tpu_custom_call.1} parent=1 // pred_fallthru
      _
    // Predicated region
    $region6: #{tpu_custom_call.1} parent=1 // pred_check
      _
    $region7: #{tpu_custom_call.1} parent=1 // pred_check_branch
      %13 = sbr.rel (0) target = $region9
    $region8: #{tpu_custom_call.1} parent=1 // pred_region
      %s15 = ssub.s32 128, 128
      %16 = vsyncadd [#allocation5], %s15
      %s18 = sshll.u32 [#allocation4], 4
      %s19 = int_to_ptr.vmem [resolvable:$true] %s18
      %21 = dma.hbm_to_vmem [thread:$0]  %s1, 128, %s19, [#allocation5]
    $region9: #{tpu_custom_call.1} parent=1 // pred_fallthru
      _
    // Predicated region
    $region10: #{tpu_custom_call.1} parent=1 // pred_check
      _
    $region11: #{tpu_custom_call.1} parent=1 // pred_check_branch
      %23 = sbr.rel (0) target = $region13
    $region12: #{tpu_custom_call.1} parent=1 // pred_region
      %24 = dma.done [#allocation5], 128
    $region13: #{tpu_custom_call.1} parent=1 // pred_fallthru
      _
    %p25 = scmp.eq.s32.totalorder 0, 0
    // Predicated region
    $region14: #{tpu_custom_call.1} parent=1 // pred_check
      %p26 = pneg %p25
    $region15: #{tpu_custom_call.1} parent=1 // pred_check_branch
      %28 = sbr.rel (%p26) target = $region17
    $region16: #{tpu_custom_call.1} parent=1 // pred_region
      %29 = vst [vmem:[#allocation2] sm:$0xff] 0.0
    $region17: #{tpu_custom_call.1} parent=1 // pred_fallthru
      _
    %v30 = vlaneseq
    %v31 = vshrl.u32 %v30, 7
    %v32 = vlaneseq
    %v33 = vand.u32 %v32, 127
    %s34 = smul.u32 0, 8
    %v35 = vstv %s34
    %v36 = vadd.s32 %v35, %v31
    %v37 = vmul.u32 %v36, 128
    %v38 = vadd.s32 %v37, %v33
    %s39 = sld [smem:[#allocation3]]
    %v40 = vstv %s39
    %v41 = vmul.f32 %v40, 1.442695
    %v42 = vpow.pop %v41
    %v43 = vand.u32 %v38, 1
    %vm44 = vcmp.eq.s32.totalorder %v43, 0
    %vm45 = vcmp.lt.s32.totalorder %v38, 32
    %v46 = vsel %vm44, -1.0, 1.0
    %v47 = vsel %vm45, 1.0, -1.0
    %v48 = vmul.f32 %v46, %v47
    %v49 = vld [vmem:[#allocation4] sm:$0xff]
    %v50 = vmul.f32 %v49, %v42
    %v51 = vmul.f32 %v50, %v48
    %v52 = vmax.f32 %v51, 0.0
    %v53 = vand.u32 2147483647, %v51
    %v54 = vsub.f32 0.0, %v53
    %v55 = vmul.f32 %v54, 1.442695
    %v56 = vpow.pop %v55
    %v57 = vadd.f32 %v56, 1.0
    %v58 = vlog2.pop %v57
    %v59 = vmul.f32 %v58, 0.6931472
    %v60 = vmul.f32 -0.5, %v56
    %v61 = vadd.f32 %v60, 1.0
    %v62 = vmul.f32 %v61, %v56
    %v63 = vand.u32 2147483647, %v56
    %vm64 = vcmp.lt.f32.partialorder %v63, 0.0004427343
    %v65 = vsel %vm64, %v62, %v59
    %v66 = vadd.f32 %v52, %v65
    %vm67 = vcmp.lt.s32.totalorder %v38, 56
    %v68 = vsel %vm45, 0.00390625, 0.0069444445
    %v69 = vsel %vm67, %v68, 0.0
    %v70 = vld [vmem:[#allocation2] sm:$0xff]
    %v71 = vmul.f32 %v66, %v69
    %v72 = vadd.f32 %v70, %v71
    %73 = vst [vmem:[#allocation2] sm:$0xff] %v72
    // Predicated region
    $region18: #{tpu_custom_call.1} parent=1 // pred_check
      %p74 = pneg %p25
    $region19: #{tpu_custom_call.1} parent=1 // pred_check_branch
      %76 = sbr.rel (%p74) target = $region21
    $region20: #{tpu_custom_call.1} parent=1 // pred_region
      %v77 = vld [vmem:[#allocation2] sm:$0xff]
      %78 = vadd.xlane.f32.xlu0 %v77
      %v79 = vpop.xlane.xlu0 %78
      %v80 = vrot.slane %v79, 4
      %v81 = vadd.f32 %v79, %v80
      %v82 = vrot.slane %v81, 2
      %v83 = vadd.f32 %v81, %v82
      %v84 = vrot.slane %v83, 1
      %v85 = vadd.f32 %v83, %v84
      %s86 = vtos %v85
      %s87 = scalar_lea.smem [#allocation7], 0
      %88 = sst [smem:[%s87]] %s86
    $region21: #{tpu_custom_call.1} parent=1 // pred_fallthru
      _
    // Predicated region
    $region22: #{tpu_custom_call.1} parent=1 // pred_check
      _
    $region23: #{tpu_custom_call.1} parent=1 // pred_check_branch
      %90 = sbr.rel (0) target = $region25
    $region24: #{tpu_custom_call.1} parent=1 // pred_region
      %s92 = ssub.s32 16, 16
      %93 = vsyncadd [#allocation6], %s92
      %96 = dma.smem_to_hbm [#allocation7], 16, %s2, [#allocation6]
    $region25: #{tpu_custom_call.1} parent=1 // pred_fallthru
      _
    // Predicated region
    $region26: #{tpu_custom_call.1} parent=1 // pred_check
      _
    $region27: #{tpu_custom_call.1} parent=1 // pred_check_branch
      %98 = sbr.rel (0) target = $region29
    $region28: #{tpu_custom_call.1} parent=1 // pred_region
      %99 = dma.done [#allocation6], 16
    $region29: #{tpu_custom_call.1} parent=1 // pred_fallthru
      _
    %100 = sfence
    %101 = vsyncpa [#allocation5], 1
    %102 = vsyncpa [#allocation6], 1

</llo_original>
